<compile_context>
chip_gen: v7x
topology: tpu7x:2x2x1
jax: 0.10.0
libtpu: 0.0.40
codegen_flags: <defaults>
</compile_context>

<pallas_src>
import jax
import jax.numpy as jnp
from jax import lax
from jax.experimental import pallas as pl
from jax.experimental.pallas import tpu as pltpu


def _attention_pooling_kernel(h_ref, mask_ref,
                              w1_ref, b1_ref, g_ref, beta_ref,
                              w2_ref, b2_ref,
                              pooled_ref):
    # h_ref:      (TB, S, H) bf16        mask_ref: (TB, 1, S) f32
    # w1_ref:     (H, H)    bf16         b1/g/beta/w2: (1, H) f32   b2: (1, 1) f32
    # pooled_ref: (TB, 1, H) f32
    TB, S, H = h_ref.shape
    h = h_ref[...]                                           # (TB, S, H) bf16

    # --- token scoring MLP: one (TB*S,H)@(H,H) MXU matmul, f32 accumulate ---
    x = jnp.dot(h.reshape(TB * S, H), w1_ref[...],
                preferred_element_type=jnp.float32)          # (TB*S, H) f32
    x = x.reshape(TB, S, H) + b1_ref[...]

    # LayerNorm over H (eps=1e-5, PyTorch default), f32
    mu = jnp.mean(x, axis=-1, keepdims=True)
    var = jnp.mean((x - mu) * (x - mu), axis=-1, keepdims=True)
    xln = (x - mu) * lax.rsqrt(var + 1e-5) * g_ref[...] + beta_ref[...]

    # exact GELU (erf based, matches nn.GELU() default)
    xg = 0.5 * xln * (1.0 + lax.erf(xln * 0.7071067811865476))

    # second Linear(H,1) as VPU multiply + lane reduce (w2 stored as (1,H) row)
    scores = jnp.sum(xg * w2_ref[...], axis=-1) + b2_ref[...]   # (TB, S)

    # --- masked softmax over the sequence axis (finite sentinel: no NaN) ----
    mask = mask_ref[:, 0, :]                                    # (TB, S)
    scores = jnp.where(mask == 0.0, jnp.float32(-1e30), scores)
    smax = jnp.max(scores, axis=-1, keepdims=True)
    e = jnp.exp(scores - smax)
    w = e * pl.reciprocal(jnp.sum(e, axis=-1, keepdims=True), approx=True)

    # --- attention-weighted pooling as a batched MXU matvec -----------------
    pooled_ref[...] = jnp.einsum(
        'bqs,bsh->bqh', w.astype(h.dtype).reshape(TB, 1, S), h,
        preferred_element_type=jnp.float32)                     # (TB, 1, H)


def regressor_head_pallas(last_hidden_state, attention_mask, params, *, tb=None):
    """last_hidden_state: (B,S,H), attention_mask: (B,S) int -> (B,1) f32."""
    B, S, H = last_hidden_state.shape
    if tb is None:
        # rows per grid step; shrink (e.g. 2-4) on v7x (64 MiB VMEM) / v5e if
        # S*H is large, grow if plenty of VMEM headroom.
        tb = min(B, 8)
    n_blk = -(-B // tb)                       # cdiv
    Bp = n_blk * tb

    h = last_hidden_state.astype(jnp.bfloat16)                  # bf16 MXU feed
    mask = attention_mask.astype(jnp.float32).reshape(B, 1, S)
    if Bp != B:                                                 # pad batch to TB multiple
        h = jnp.pad(h, ((0, Bp - B), (0, 0), (0, 0)))
        mask = jnp.pad(mask, ((0, Bp - B), (0, 0), (0, 0)))

    w1 = params["w1"].astype(jnp.bfloat16)                      # (H, H) bf16
    b1 = params["b1"].reshape(1, H)
    ln_g = params["ln_g"].reshape(1, H)
    ln_b = params["ln_b"].reshape(1, H)
    w2 = params["w2"].reshape(1, H)                             # (H,1) -> row for VPU reduce
    b2 = params["b2"].reshape(1, 1)

    pooled = pl.pallas_call(
        _attention_pooling_kernel,
        out_shape=jax.ShapeDtypeStruct((Bp, 1, H), jnp.float32),
        grid_spec=pltpu.PrefetchScalarGridSpec(
            num_scalar_prefetch=0,
            grid=(n_blk,),
            in_specs=[
                pl.BlockSpec((tb, S, H), lambda b: (b, 0, 0)),  # hidden states (bf16)
                pl.BlockSpec((tb, 1, S), lambda b: (b, 0, 0)),  # attention mask
                pl.BlockSpec((H, H), lambda b: (0, 0)),         # W1 (bf16, resident: const index)
                pl.BlockSpec((1, H), lambda b: (0, 0)),         # b1
                pl.BlockSpec((1, H), lambda b: (0, 0)),         # LN gamma
                pl.BlockSpec((1, H), lambda b: (0, 0)),         # LN beta
                pl.BlockSpec((1, H), lambda b: (0, 0)),         # W2 row
                pl.BlockSpec((1, 1), lambda b: (0, 0)),         # b2
            ],
            out_specs=pl.BlockSpec((tb, 1, H), lambda b: (b, 0, 0)),  # lane-dense pooled
        ),
        compiler_params=pltpu.CompilerParams(
            dimension_semantics=("parallel",),                  # shards grid across v7x TCs
            vmem_limit_bytes=48 * 1024 * 1024),
    )(h, mask, w1, b1, ln_g, ln_b, w2, b2)

    pooled = pooled.reshape(Bp, H)[:B]                          # (B, H) lane-dense

    # regressor head: Dropout (identity at inference) -> Linear(H,1); tiny, plain JAX.
    pred = pooled @ params["wr"] + params["br"]                 # (B, 1) f32
    return pred


def init_params(key, hidden, vocab):
    ks = jax.random.split(key, 6)
    return {
        # backbone stub: token embedding table
        "emb": jax.random.normal(ks[0], (vocab, hidden), jnp.float32) * 0.02,
        # AttentionPooling: Linear(H,H) -> LayerNorm(H) -> GELU -> Linear(H,1)
        "w1": jax.random.normal(ks[1], (hidden, hidden), jnp.float32) * 0.05,
        "b1": jax.random.normal(ks[2], (1, hidden), jnp.float32) * 0.01,
        "ln_g": jnp.ones((1, hidden), jnp.float32),
        "ln_b": jnp.zeros((1, hidden), jnp.float32),
        "w2": jax.random.normal(ks[3], (hidden, 1), jnp.float32) * 0.05,
        "b2": jnp.zeros((1, 1), jnp.float32),
        # regressor: Dropout -> Linear(H,1)
        "wr": jax.random.normal(ks[4], (hidden, 1), jnp.float32) * 0.05,
        "br": jnp.zeros((1, 1), jnp.float32),
    }


def regressor_forward(input_ids, attention_mask, params, *, tb=None):
    # TODO(synk): DebertaModel backbone replaced by an embedding lookup (no
    # pretrained weights available); everything downstream runs in Pallas.
    last_hidden_state = params["emb"][input_ids]        # (B, S, H) plain-JAX glue
    return regressor_head_pallas(last_hidden_state, attention_mask, params, tb=tb)


if __name__ == "__main__":
    B, S, H, VOCAB = 4, 8, 32, 100   # small stand-in for DeBERTa (seq, 768)

    key = jax.random.PRNGKey(0)
    k_ids, k_params = jax.random.split(key)
    input_ids = jax.random.randint(k_ids, (B, S), 0, VOCAB, dtype=jnp.int32)
    attention_mask = jnp.array(
        [[1] * S,
         [1] * (S - 3) + [0] * 3,
         [1] * (S - 5) + [0] * 5,
         [0] * S],                   # fully padded row: exercises the finite-mask path
        dtype=jnp.int32)
    params = init_params(k_params, H, VOCAB)

    # tb=2 -> 2 rows per grid step, grid=(2,), exercises batching + parallel axis
    pred = regressor_forward(input_ids, attention_mask, params, tb=2)
    jax.block_until_ready(pred)
    assert pred.shape == (B, 1) and pred.dtype == jnp.float32
    assert bool(jnp.all(jnp.isfinite(pred)))   # fully-masked row must not NaN
    print("KERNEL_OK")
</pallas_src>

<mosaic_0001>
module attributes {stable_mosaic.version = 11 : i64} {
  func.func @_attention_pooling_kernel(%arg0: i32, %arg1: memref<2x8x32xbf16, #tpu.memory_space<vmem>>, %arg2: memref<2x1x8xf32, #tpu.memory_space<vmem>>, %arg3: memref<32x32xbf16, #tpu.memory_space<vmem>>, %arg4: memref<1x32xf32, #tpu.memory_space<vmem>>, %arg5: memref<1x32xf32, #tpu.memory_space<vmem>>, %arg6: memref<1x32xf32, #tpu.memory_space<vmem>>, %arg7: memref<1x32xf32, #tpu.memory_space<vmem>>, %arg8: memref<1x1xf32, #tpu.memory_space<vmem>>, %arg9: memref<2x1x32xf32, #tpu.memory_space<vmem>>) attributes {dimension_semantics = [#tpu.dimension_semantics<parallel>], iteration_bounds = array<i64: 2>, scalar_prefetch = 0 : i64, scratch_operands = 0 : i64, tpu.core_type = #tpu.core_type<tc>, window_params = [{transform_indices = @transform_0, window_bounds = array<i64: 2, 8, 32>}, {transform_indices = @transform_1, window_bounds = array<i64: 2, 1, 8>}, {pipeline_mode = #tpu.pipeline_mode<synchronous>, transform_indices = @transform_2, window_bounds = array<i64: 32, 32>}, {pipeline_mode = #tpu.pipeline_mode<synchronous>, transform_indices = @transform_3, window_bounds = array<i64: 1, 32>}, {pipeline_mode = #tpu.pipeline_mode<synchronous>, transform_indices = @transform_4, window_bounds = array<i64: 1, 32>}, {pipeline_mode = #tpu.pipeline_mode<synchronous>, transform_indices = @transform_5, window_bounds = array<i64: 1, 32>}, {pipeline_mode = #tpu.pipeline_mode<synchronous>, transform_indices = @transform_6, window_bounds = array<i64: 1, 32>}, {pipeline_mode = #tpu.pipeline_mode<synchronous>, transform_indices = @transform_7, window_bounds = array<i64: 1, 1>}, {transform_indices = @transform_8, window_bounds = array<i64: 2, 1, 32>}]} {
    %c0 = arith.constant 0 : index
    %c0_0 = arith.constant 0 : index
    %c0_1 = arith.constant 0 : index
    %0 = vector.load %arg1[%c0, %c0_0, %c0_1] : memref<2x8x32xbf16, #tpu.memory_space<vmem>>, vector<2x8x32xbf16>
    %1 = vector.shape_cast %0 : vector<2x8x32xbf16> to vector<16x32xbf16>
    %c0_2 = arith.constant 0 : index
    %c0_3 = arith.constant 0 : index
    %2 = vector.load %arg3[%c0_2, %c0_3] : memref<32x32xbf16, #tpu.memory_space<vmem>>, vector<32x32xbf16>
    %cst = arith.constant dense<0.000000e+00> : vector<16x32xf32>
    %3 = tpu.matmul %1, %2, %cst {dimension_numbers = #tpu.dot_dimension_numbers<[1], [0], [0], [1], [0, 0, 1, 1], [], []>} : vector<16x32xbf16>, vector<32x32xbf16>, vector<16x32xf32> -> vector<16x32xf32>
    %4 = vector.shape_cast %3 : vector<16x32xf32> to vector<2x8x32xf32>
    %c0_4 = arith.constant 0 : index
    %c0_5 = arith.constant 0 : index
    %5 = vector.load %arg4[%c0_4, %c0_5] : memref<1x32xf32, #tpu.memory_space<vmem>>, vector<1x32xf32>
    %6 = vector.shape_cast %5 : vector<1x32xf32> to vector<1x1x32xf32>
    %7 = vector.broadcast %6 : vector<1x1x32xf32> to vector<2x8x32xf32>
    %8 = arith.addf %4, %7 : vector<2x8x32xf32>
    %cst_6 = arith.constant dense<0.000000e+00> : vector<2x8xf32>
    %9 = vector.multi_reduction <add>, %8, %cst_6 [2] : vector<2x8x32xf32> to vector<2x8xf32>
    %10 = vector.shape_cast %9 : vector<2x8xf32> to vector<2x8x1xf32>
    %cst_7 = arith.constant 3.200000e+01 : f32
    %11 = vector.broadcast %cst_7 : f32 to vector<2x8x1xf32>
    %12 = arith.divf %10, %11 : vector<2x8x1xf32>
    %13 = vector.broadcast %12 : vector<2x8x1xf32> to vector<2x8x32xf32>
    %14 = arith.subf %8, %13 : vector<2x8x32xf32>
    %15 = vector.broadcast %12 : vector<2x8x1xf32> to vector<2x8x32xf32>
    %16 = arith.subf %8, %15 : vector<2x8x32xf32>
    %17 = arith.mulf %14, %16 : vector<2x8x32xf32>
    %cst_8 = arith.constant dense<0.000000e+00> : vector<2x8xf32>
    %18 = vector.multi_reduction <add>, %17, %cst_8 [2] : vector<2x8x32xf32> to vector<2x8xf32>
    %19 = vector.shape_cast %18 : vector<2x8xf32> to vector<2x8x1xf32>
    %cst_9 = arith.constant 3.200000e+01 : f32
    %20 = vector.broadcast %cst_9 : f32 to vector<2x8x1xf32>
    %21 = arith.divf %19, %20 : vector<2x8x1xf32>
    %22 = vector.broadcast %12 : vector<2x8x1xf32> to vector<2x8x32xf32>
    %23 = arith.subf %8, %22 : vector<2x8x32xf32>
    %cst_10 = arith.constant 9.99999974E-6 : f32
    %24 = vector.broadcast %cst_10 : f32 to vector<2x8x1xf32>
    %25 = arith.addf %21, %24 : vector<2x8x1xf32>
    %26 = math.rsqrt %25 : vector<2x8x1xf32>
    %27 = vector.broadcast %26 : vector<2x8x1xf32> to vector<2x8x32xf32>
    %28 = arith.mulf %23, %27 : vector<2x8x32xf32>
    %c0_11 = arith.constant 0 : index
    %c0_12 = arith.constant 0 : index
    %29 = vector.load %arg5[%c0_11, %c0_12] : memref<1x32xf32, #tpu.memory_space<vmem>>, vector<1x32xf32>
    %30 = vector.shape_cast %29 : vector<1x32xf32> to vector<1x1x32xf32>
    %31 = vector.broadcast %30 : vector<1x1x32xf32> to vector<2x8x32xf32>
    %32 = arith.mulf %28, %31 : vector<2x8x32xf32>
    %c0_13 = arith.constant 0 : index
    %c0_14 = arith.constant 0 : index
    %33 = vector.load %arg6[%c0_13, %c0_14] : memref<1x32xf32, #tpu.memory_space<vmem>>, vector<1x32xf32>
    %34 = vector.shape_cast %33 : vector<1x32xf32> to vector<1x1x32xf32>
    %35 = vector.broadcast %34 : vector<1x1x32xf32> to vector<2x8x32xf32>
    %36 = arith.addf %32, %35 : vector<2x8x32xf32>
    %cst_15 = arith.constant 5.000000e-01 : f32
    %37 = vector.broadcast %cst_15 : f32 to vector<2x8x32xf32>
    %38 = arith.mulf %37, %36 : vector<2x8x32xf32>
    %cst_16 = arith.constant 0.707106769 : f32
    %39 = vector.broadcast %cst_16 : f32 to vector<2x8x32xf32>
    %40 = arith.mulf %36, %39 : vector<2x8x32xf32>
    %41 = math.erf %40 : vector<2x8x32xf32>
    %cst_17 = arith.constant 1.000000e+00 : f32
    %42 = vector.broadcast %cst_17 : f32 to vector<2x8x32xf32>
    %43 = arith.addf %42, %41 : vector<2x8x32xf32>
    %44 = arith.mulf %38, %43 : vector<2x8x32xf32>
    %c0_18 = arith.constant 0 : index
    %c0_19 = arith.constant 0 : index
    %45 = vector.load %arg7[%c0_18, %c0_19] : memref<1x32xf32, #tpu.memory_space<vmem>>, vector<1x32xf32>
    %46 = vector.shape_cast %45 : vector<1x32xf32> to vector<1x1x32xf32>
    %47 = vector.broadcast %46 : vector<1x1x32xf32> to vector<2x8x32xf32>
    %48 = arith.mulf %44, %47 : vector<2x8x32xf32>
    %cst_20 = arith.constant dense<0.000000e+00> : vector<2x8xf32>
    %49 = vector.multi_reduction <add>, %48, %cst_20 [2] : vector<2x8x32xf32> to vector<2x8xf32>
    %c0_21 = arith.constant 0 : index
    %c0_22 = arith.constant 0 : index
    %50 = vector.load %arg8[%c0_21, %c0_22] : memref<1x1xf32, #tpu.memory_space<vmem>>, vector<1x1xf32>
    %51 = vector.broadcast %50 : vector<1x1xf32> to vector<2x8xf32>
    %52 = arith.addf %49, %51 : vector<2x8xf32>
    %c0_23 = arith.constant 0 : index
    %c0_24 = arith.constant 0 : index
    %c0_25 = arith.constant 0 : index
    %53 = vector.load %arg2[%c0_23, %c0_24, %c0_25] : memref<2x1x8xf32, #tpu.memory_space<vmem>>, vector<2x1x8xf32>
    %54 = vector.shape_cast %53 : vector<2x1x8xf32> to vector<2x8xf32>
    %cst_26 = arith.constant 0.000000e+00 : f32
    %55 = vector.broadcast %cst_26 : f32 to vector<2x8xf32>
    %56 = arith.cmpf oeq, %54, %55 : vector<2x8xf32>
    %cst_27 = arith.constant -1.000000e+30 : f32
    %57 = vector.broadcast %cst_27 : f32 to vector<2x8xf32>
    %58 = arith.select %56, %57, %52 : vector<2x8xi1>, vector<2x8xf32>
    %cst_28 = arith.constant dense<0xFF800000> : vector<2xf32>
    %59 = vector.multi_reduction <maximumf>, %58, %cst_28 [1] : vector<2x8xf32> to vector<2xf32>
    %60 = vector.shape_cast %59 : vector<2xf32> to vector<2x1xf32>
    %61 = vector.broadcast %60 : vector<2x1xf32> to vector<2x8xf32>
    %62 = arith.subf %58, %61 : vector<2x8xf32>
    %63 = math.exp %62 : vector<2x8xf32>
    %cst_29 = arith.constant dense<0.000000e+00> : vector<2xf32>
    %64 = vector.multi_reduction <add>, %63, %cst_29 [1] : vector<2x8xf32> to vector<2xf32>
    %65 = vector.shape_cast %64 : vector<2xf32> to vector<2x1xf32>
    %66 = tpu.reciprocal %65 {approx = true} : vector<2x1xf32> -> vector<2x1xf32>
    %67 = vector.broadcast %66 : vector<2x1xf32> to vector<2x8xf32>
    %68 = arith.mulf %63, %67 : vector<2x8xf32>
    %69 = arith.truncf %68 : vector<2x8xf32> to vector<2x8xbf16>
    %70 = vector.shape_cast %69 : vector<2x8xbf16> to vector<2x1x8xbf16>
    "tpu.trace_start"() <{level = 10 : i32, message = "bqs,bsh->bqh"}> : () -> ()
    %cst_30 = arith.constant dense<0.000000e+00> : vector<2x1x32xf32>
    %71 = tpu.matmul %70, %0, %cst_30 {dimension_numbers = #tpu.dot_dimension_numbers<[2], [1], [1], [2], [0, 0, 0, 1, 1, 2], [0], [0]>} : vector<2x1x8xbf16>, vector<2x8x32xbf16>, vector<2x1x32xf32> -> vector<2x1x32xf32>
    "tpu.trace_stop"() : () -> ()
    %c0_31 = arith.constant 0 : index
    %c0_32 = arith.constant 0 : index
    %c0_33 = arith.constant 0 : index
    %72 = vector.load %arg9[%c0_31, %c0_32, %c0_33] : memref<2x1x32xf32, #tpu.memory_space<vmem>>, vector<2x1x32xf32>
    tpu.vector_store %arg9[%c0_31, %c0_32, %c0_33], %71 {strides = array<i32>} : memref<2x1x32xf32, #tpu.memory_space<vmem>>, vector<2x1x32xf32>,
    return
  }
  func.func @transform_0(%arg0: i32) -> (i32, i32, i32) {
    %c0_i32 = arith.constant 0 : i32
    %c0_i32_0 = arith.constant 0 : i32
    %c0_i32_1 = arith.constant 0 : i32
    return %arg0, %c0_i32, %c0_i32_0 : i32, i32, i32
  }
  func.func @transform_1(%arg0: i32) -> (i32, i32, i32) {
    %c0_i32 = arith.constant 0 : i32
    %c0_i32_0 = arith.constant 0 : i32
    %c0_i32_1 = arith.constant 0 : i32
    return %arg0, %c0_i32, %c0_i32_0 : i32, i32, i32
  }
  func.func @transform_2(%arg0: i32) -> (i32, i32) {
    %c0_i32 = arith.constant 0 : i32
    %c0_i32_0 = arith.constant 0 : i32
    %c0_i32_1 = arith.constant 0 : i32
    return %c0_i32, %c0_i32_0 : i32, i32
  }
  func.func @transform_3(%arg0: i32) -> (i32, i32) {
    %c0_i32 = arith.constant 0 : i32
    %c0_i32_0 = arith.constant 0 : i32
    %c0_i32_1 = arith.constant 0 : i32
    return %c0_i32, %c0_i32_0 : i32, i32
  }
  func.func @transform_4(%arg0: i32) -> (i32, i32) {
    %c0_i32 = arith.constant 0 : i32
    %c0_i32_0 = arith.constant 0 : i32
    %c0_i32_1 = arith.constant 0 : i32
    return %c0_i32, %c0_i32_0 : i32, i32
  }
  func.func @transform_5(%arg0: i32) -> (i32, i32) {
    %c0_i32 = arith.constant 0 : i32
    %c0_i32_0 = arith.constant 0 : i32
    %c0_i32_1 = arith.constant 0 : i32
    return %c0_i32, %c0_i32_0 : i32, i32
  }
  func.func @transform_6(%arg0: i32) -> (i32, i32) {
    %c0_i32 = arith.constant 0 : i32
    %c0_i32_0 = arith.constant 0 : i32
    %c0_i32_1 = arith.constant 0 : i32
    return %c0_i32, %c0_i32_0 : i32, i32
  }
  func.func @transform_7(%arg0: i32) -> (i32, i32) {
    %c0_i32 = arith.constant 0 : i32
    %c0_i32_0 = arith.constant 0 : i32
    %c0_i32_1 = arith.constant 0 : i32
    return %c0_i32, %c0_i32_0 : i32, i32
  }
  func.func @transform_8(%arg0: i32) -> (i32, i32, i32) {
    %c0_i32 = arith.constant 0 : i32
    %c0_i32_0 = arith.constant 0 : i32
    %c0_i32_1 = arith.constant 0 : i32
    return %arg0, %c0_i32, %c0_i32_0 : i32, i32, i32
  }
}

</mosaic_0001>

<llo_original>
// kernel: tpu_custom_call.1
$region0: #{tpu_custom_call.1}
  #allocation0 [shape = 'u32[]', space=smem, size = 0x4, offset = 0x4, fixed_abs, tag = 'smem constant byte address 0x4 - core index']
  #allocation1 [shape = 'u32[144,128]{1,0:T(1,128)}', space=vmem, size = 0x12000, scoped, tag = 'internal scratch']
  #allocation2 [shape = 'f32[1,1]{1,0:T(1,128)S(1)}', space=vmem, size = 0x200, scoped, tag = 'scoped memory for tpu_custom_call.1']
  %s0 = inlined_call_operand.hbm [shape: bf16[4,8,32], index: 0, kind: input, shape index: {}]
  %s1 = inlined_call_operand.vmem [shape: f32[4,1,8], index: 1, kind: input, shape index: {}]
  %s2 = inlined_call_operand.hbm [shape: bf16[32,32], index: 2, kind: input, shape index: {}]
  %s3 = inlined_call_operand.vmem [shape: f32[1,32], index: 3, kind: input, shape index: {}]
  %s4 = inlined_call_operand.vmem [shape: f32[1,32], index: 4, kind: input, shape index: {}]
  %s5 = inlined_call_operand.vmem [shape: f32[1,32], index: 5, kind: input, shape index: {}]
  %s6 = inlined_call_operand.vmem [shape: f32[1,32], index: 6, kind: input, shape index: {}]
  %s7 = inlined_call_operand.<no memory space> [shape: f32[1,1], index: 7, kind: input, shape index: {}]
  %s8 = inlined_call_operand.hbm [shape: f32[4,1,32], index: 8, kind: output, shape index: {}]
  %s9 = sld [smem:[#allocation0]]
  $region73: #{tpu_custom_call.1} parent=0
    _
  %s11 = ssub.s32 1, %s9
  %s12 = scalar_select 0, %s11, %s9
  %v13 = vstv %s7
  %14 = vst [vmem:[#allocation2] sm:$0x1] %v13
  $region1: #{tpu_custom_call.1} parent=0
    #allocation3 [shape = 'u8[8192]{0}', space=vmem, size = 0x2000, scoped, tag = 'input window, operand 0']
    #allocation4 [shape = 's32[2]{0}', space=sflag, size = 0x8, scoped, tag = 'scoped memory for tpu_custom_call.1']
    #allocation5 [shape = 's32[2]{0}', space=sflag, size = 0x8, scoped, tag = 'scoped memory for tpu_custom_call.1']
    #allocation6 [shape = 'u8[8192]{0}', space=vmem, size = 0x2000, scoped, tag = 'input window, operand 2, single buffered']
    #allocation7 [shape = 's32[1]{0}', space=sflag, size = 0x4, scoped, tag = 'scoped memory for tpu_custom_call.1']
    #allocation8 [shape = 'u8[2048]{0}', space=vmem, size = 0x800, scoped, tag = 'output window, operand 0']
    %15 = vsyncpa [#allocation4], 0
    %s16 = scalar_lea.sflag [#allocation4], 1
    %17 = vsyncpa %s16, 0
    %18 = vsyncpa [#allocation7], 0
    %19 = vsyncpa [#allocation5], 0
    %s20 = scalar_lea.sflag [#allocation5], 1
    %21 = vsyncpa %s20, 0
    loop: start=0, step=1, limit=4
    $region2: #{tpu_custom_call.1} parent=1 // loop_pre_header
      _
    $region3: #{tpu_custom_call.1} parent=1 // loop_header
      %s23 = sphi 0, %s27
      %p24 = scmp.ge.s32.totalorder %s23, 4
      %s33 = sphi 0, %s35
      %s36 = sphi 0, %s33
      %s37 = sphi 0, %s36
      %s53 = sphi 0, %s37
      %s59 = sphi 0, %s61
      %s62 = sphi 0, %s59
      %s63 = sphi 0, %s62
      %s79 = sphi 0, %s63
      %s83 = sphi 0, %s83
      %s85 = sphi 0, %s83
      %s86 = sphi 0, %s85
      %s100 = sphi 0, %s86
      %s104 = sphi 0, %s104
      %s106 = sphi 0, %s104
      %s107 = sphi 0, %s106
      %s121 = sphi 0, %s107
      %s125 = sphi 0, %s125
      %s127 = sphi 0, %s125
      %s128 = sphi 0, %s127
      %s142 = sphi 0, %s128
      %s146 = sphi 0, %s146
      %s148 = sphi 0, %s146
      %s149 = sphi 0, %s148
      %s163 = sphi 0, %s149
      %s167 = sphi 0, %s167
      %s169 = sphi 0, %s167
      %s170 = sphi 0, %s169
      %s184 = sphi 0, %s170
      %s188 = sphi 0, %s188
      %s190 = sphi 0, %s188
      %s191 = sphi 0, %s190
      %s205 = sphi 0, %s191
      %s211 = sphi 0, %s213
      %s214 = sphi 0, %s211
      %s215 = sphi 0, %s214
      %s231 = sphi 0, %s215
    $region4: #{tpu_custom_call.1} parent=1 // loop_header_branch
      %26 = sbr.rel (%p24) target = $region8
    $region5: #{tpu_custom_call.1} parent=1 // loop_body
      %s28 = ssub.s32 %s23, 1
      %s29 = ssub.s32 %s23, 2
      %s30 = sadd.s32 %s23, 1
      %s31 = ssub.s32 %s23, %s30
      %p32 = scmp.eq.s32.totalorder %s31, 0
      %s34 = sadd.s32 %s33, 1
      %s35 = scalar_select %p32, %s33, %s34
      %p38 = pneg %p32
      %p39 = scmp.eq.s32.totalorder %s23, 1
      %p40 = por %p38, %p39
      %p41 = scmp.ne.s32.totalorder %s33, %s36
      %p42 = scmp.eq.s32.totalorder %s23, 0
      %p43 = por %p41, %p42
      %p44 = scmp.ne.s32.totalorder %s33, %s36
      %p45 = scmp.eq.s32.totalorder %s28, 1
      %p46 = por %p44, %p45
      %p47 = scmp.ne.s32.totalorder %s36, %s37
      %p48 = scmp.eq.s32.totalorder %s28, 0
      %p49 = por %p47, %p48
      %p50 = scmp.ne.s32.totalorder %s36, %s37
      %p51 = scmp.eq.s32.totalorder %s29, 1
      %p52 = por %p50, %p51
      %p54 = scmp.ne.s32.totalorder %s37, %s53
      %p55 = scmp.eq.s32.totalorder %s29, 0
      %p56 = por %p54, %p55
      %s57 = ssub.s32 %s23, %s30
      %p58 = scmp.eq.s32.totalorder %s57, 0
      %s60 = sadd.s32 %s59, 1
      %s61 = scalar_select %p58, %s59, %s60
      %p64 = pneg %p58
      %p65 = scmp.eq.s32.totalorder %s23, 1
      %p66 = por %p64, %p65
      %p67 = scmp.ne.s32.totalorder %s59, %s62
      %p68 = scmp.eq.s32.totalorder %s23, 0
      %p69 = por %p67, %p68
      %p70 = scmp.ne.s32.totalorder %s59, %s62
      %p71 = scmp.eq.s32.totalorder %s28, 1
      %p72 = por %p70, %p71
      %p73 = scmp.ne.s32.totalorder %s62, %s63
      %p74 = scmp.eq.s32.totalorder %s28, 0
      %p75 = por %p73, %p74
      %p76 = scmp.ne.s32.totalorder %s62, %s63
      %p77 = scmp.eq.s32.totalorder %s29, 1
      %p78 = por %p76, %p77
      %p80 = scmp.ne.s32.totalorder %s63, %s79
      %p81 = scmp.eq.s32.totalorder %s29, 0
      %p82 = por %p80, %p81
      %s84 = sadd.s32 %s83, 1
      %p87 = scmp.eq.s32.totalorder %s23, 1
      %p88 = scmp.ne.s32.totalorder %s83, %s85
      %p89 = scmp.eq.s32.totalorder %s23, 0
      %p90 = por %p88, %p89
      %p91 = scmp.ne.s32.totalorder %s83, %s85
      %p92 = scmp.eq.s32.totalorder %s28, 1
      %p93 = por %p91, %p92
      %p94 = scmp.ne.s32.totalorder %s85, %s86
      %p95 = scmp.eq.s32.totalorder %s28, 0
      %p96 = por %p94, %p95
      %p97 = scmp.ne.s32.totalorder %s85, %s86
      %p98 = scmp.eq.s32.totalorder %s29, 1
      %p99 = por %p97, %p98
      %p101 = scmp.ne.s32.totalorder %s86, %s100
      %p102 = scmp.eq.s32.totalorder %s29, 0
      %p103 = por %p101, %p102
      %s105 = sadd.s32 %s104, 1
      %p108 = scmp.eq.s32.totalorder %s23, 1
      %p109 = scmp.ne.s32.totalorder %s104, %s106
      %p110 = scmp.eq.s32.totalorder %s23, 0
      %p111 = por %p109, %p110
      %p112 = scmp.ne.s32.totalorder %s104, %s106
      %p113 = scmp.eq.s32.totalorder %s28, 1
      %p114 = por %p112, %p113
      %p115 = scmp.ne.s32.totalorder %s106, %s107
      %p116 = scmp.eq.s32.totalorder %s28, 0
      %p117 = por %p115, %p116
      %p118 = scmp.ne.s32.totalorder %s106, %s107
      %p119 = scmp.eq.s32.totalorder %s29, 1
      %p120 = por %p118, %p119
      %p122 = scmp.ne.s32.totalorder %s107, %s121
      %p123 = scmp.eq.s32.totalorder %s29, 0
      %p124 = por %p122, %p123
      %s126 = sadd.s32 %s125, 1
      %p129 = scmp.eq.s32.totalorder %s23, 1
      %p130 = scmp.ne.s32.totalorder %s125, %s127
      %p131 = scmp.eq.s32.totalorder %s23, 0
      %p132 = por %p130, %p131
      %p133 = scmp.ne.s32.totalorder %s125, %s127
      %p134 = scmp.eq.s32.totalorder %s28, 1
      %p135 = por %p133, %p134
      %p136 = scmp.ne.s32.totalorder %s127, %s128
      %p137 = scmp.eq.s32.totalorder %s28, 0
      %p138 = por %p136, %p137
      %p139 = scmp.ne.s32.totalorder %s127, %s128
      %p140 = scmp.eq.s32.totalorder %s29, 1
      %p141 = por %p139, %p140
      %p143 = scmp.ne.s32.totalorder %s128, %s142
      %p144 = scmp.eq.s32.totalorder %s29, 0
      %p145 = por %p143, %p144
      %s147 = sadd.s32 %s146, 1
      %p150 = scmp.eq.s32.totalorder %s23, 1
      %p151 = scmp.ne.s32.totalorder %s146, %s148
      %p152 = scmp.eq.s32.totalorder %s23, 0
      %p153 = por %p151, %p152
      %p154 = scmp.ne.s32.totalorder %s146, %s148
      %p155 = scmp.eq.s32.totalorder %s28, 1
      %p156 = por %p154, %p155
      %p157 = scmp.ne.s32.totalorder %s148, %s149
      %p158 = scmp.eq.s32.totalorder %s28, 0
      %p159 = por %p157, %p158
      %p160 = scmp.ne.s32.totalorder %s148, %s149
      %p161 = scmp.eq.s32.totalorder %s29, 1
      %p162 = por %p160, %p161
      %p164 = scmp.ne.s32.totalorder %s149, %s163
      %p165 = scmp.eq.s32.totalorder %s29, 0
      %p166 = por %p164, %p165
      %s168 = sadd.s32 %s167, 1
      %p171 = scmp.eq.s32.totalorder %s23, 1
      %p172 = scmp.ne.s32.totalorder %s167, %s169
      %p173 = scmp.eq.s32.totalorder %s23, 0
      %p174 = por %p172, %p173
      %p175 = scmp.ne.s32.totalorder %s167, %s169
      %p176 = scmp.eq.s32.totalorder %s28, 1
      %p177 = por %p175, %p176
      %p178 = scmp.ne.s32.totalorder %s169, %s170
      %p179 = scmp.eq.s32.totalorder %s28, 0
      %p180 = por %p178, %p179
      %p181 = scmp.ne.s32.totalorder %s169, %s170
      %p182 = scmp.eq.s32.totalorder %s29, 1
      %p183 = por %p181, %p182
      %p185 = scmp.ne.s32.totalorder %s170, %s184
      %p186 = scmp.eq.s32.totalorder %s29, 0
      %p187 = por %p185, %p186
      %s189 = sadd.s32 %s188, 1
      %p192 = scmp.eq.s32.totalorder %s23, 1
      %p193 = scmp.ne.s32.totalorder %s188, %s190
      %p194 = scmp.eq.s32.totalorder %s23, 0
      %p195 = por %p193, %p194
      %p196 = scmp.ne.s32.totalorder %s188, %s190
      %p197 = scmp.eq.s32.totalorder %s28, 1
      %p198 = por %p196, %p197
      %p199 = scmp.ne.s32.totalorder %s190, %s191
      %p200 = scmp.eq.s32.totalorder %s28, 0
      %p201 = por %p199, %p200
      %p202 = scmp.ne.s32.totalorder %s190, %s191
      %p203 = scmp.eq.s32.totalorder %s29, 1
      %p204 = por %p202, %p203
      %p206 = scmp.ne.s32.totalorder %s191, %s205
      %p207 = scmp.eq.s32.totalorder %s29, 0
      %p208 = por %p206, %p207
      %s209 = ssub.s32 %s23, %s30
      %p210 = scmp.eq.s32.totalorder %s209, 0
      %s212 = sadd.s32 %s211, 1
      %s213 = scalar_select %p210, %s211, %s212
      %p216 = pneg %p210
      %p217 = scmp.eq.s32.totalorder %s23, 1
      %p218 = por %p216, %p217
      %p219 = scmp.ne.s32.totalorder %s211, %s214
      %p220 = scmp.eq.s32.totalorder %s23, 0
      %p221 = por %p219, %p220
      %p222 = scmp.ne.s32.totalorder %s211, %s214
      %p223 = scmp.eq.s32.totalorder %s28, 1
      %p224 = por %p222, %p223
      %p225 = scmp.ne.s32.totalorder %s214, %s215
      %p226 = scmp.eq.s32.totalorder %s28, 0
      %p227 = por %p225, %p226
      %p228 = scmp.ne.s32.totalorder %s214, %s215
      %p229 = scmp.eq.s32.totalorder %s29, 1
      %p230 = por %p228, %p229
      %p232 = scmp.ne.s32.totalorder %s215, %s231
      %p233 = scmp.eq.s32.totalorder %s29, 0
      %p234 = por %p232, %p233
      %p235 = scmp.le.s32.totalorder 1, %s23
      %p236 = scmp.lt.s32.totalorder %s23, 3
      %p237 = pnand %p235, %p236
      %p238 = pneg %p237
      // Predicated region
      $region9: #{tpu_custom_call.1} parent=5 // pred_check
        _
      $region10: #{tpu_custom_call.1} parent=5 // pred_check_branch
        %240 = sbr.rel (%p237) target = $region12
      $region11: #{tpu_custom_call.1} parent=5 // pred_region
        %s241 = ssub.s32 %s23, 1
        // Predicated region
        $region13: #{tpu_custom_call.1} parent=11 // pred_check
          %p242 = pneg %p96
        $region14: #{tpu_custom_call.1} parent=11 // pred_check_branch
          %244 = sbr.rel (%p242) target = $region16
        $region15: #{tpu_custom_call.1} parent=11 // pred_region
          %s246 = ssub.s32 256, 256
          %247 = vsyncadd [#allocation7], %s246
          %s248 = sshll.u32 [#allocation6], 4
          %s249 = int_to_ptr.vmem [resolvable:$true] %s248
          %254 = dma.hbm_to_vmem [thread:$0]  %s2, 256, %s249, [#allocation7], 64, 64, 4
        $region16: #{tpu_custom_call.1} parent=11 // pred_fallthru
          _
        // Predicated region
        $region17: #{tpu_custom_call.1} parent=11 // pred_check
          %p255 = pneg %p117
        $region18: #{tpu_custom_call.1} parent=11 // pred_check_branch
          %257 = sbr.rel (%p255) target = $region20
        $region19: #{tpu_custom_call.1} parent=11 // pred_region
          _
        $region20: #{tpu_custom_call.1} parent=11 // pred_fallthru
          _
        // Predicated region
        $region21: #{tpu_custom_call.1} parent=11 // pred_check
          %p258 = pneg %p138
        $region22: #{tpu_custom_call.1} parent=11 // pred_check_branch
          %260 = sbr.rel (%p258) target = $region24
        $region23: #{tpu_custom_call.1} parent=11 // pred_region
          _
        $region24: #{tpu_custom_call.1} parent=11 // pred_fallthru
          _
        // Predicated region
        $region25: #{tpu_custom_call.1} parent=11 // pred_check
          %p261 = pneg %p159
        $region26: #{tpu_custom_call.1} parent=11 // pred_check_branch
          %263 = sbr.rel (%p261) target = $region28
        $region27: #{tpu_custom_call.1} parent=11 // pred_region
          _
        $region28: #{tpu_custom_call.1} parent=11 // pred_fallthru
          _
        // Predicated region
        $region29: #{tpu_custom_call.1} parent=11 // pred_check
          %p264 = pneg %p180
        $region30: #{tpu_custom_call.1} parent=11 // pred_check_branch
          %266 = sbr.rel (%p264) target = $region32
        $region31: #{tpu_custom_call.1} parent=11 // pred_region
          _
        $region32: #{tpu_custom_call.1} parent=11 // pred_fallthru
          _
        // Predicated region
        $region33: #{tpu_custom_call.1} parent=11 // pred_check
          %p267 = pneg %p201
        $region34: #{tpu_custom_call.1} parent=11 // pred_check_branch
          %269 = sbr.rel (%p267) target = $region36
        $region35: #{tpu_custom_call.1} parent=11 // pred_region
          _
        $region36: #{tpu_custom_call.1} parent=11 // pred_fallthru
          _
      $region12: #{tpu_custom_call.1} parent=5 // pred_fallthru
        _
      %p270 = scmp.lt.s32.totalorder %s23, 2
      // Predicated region
      $region37: #{tpu_custom_call.1} parent=5 // pred_check
        %p271 = pneg %p270
      $region38: #{tpu_custom_call.1} parent=5 // pred_check_branch
        %273 = sbr.rel (%p271) target = $region40
      $region39: #{tpu_custom_call.1} parent=5 // pred_region
        // Predicated region
        $region41: #{tpu_custom_call.1} parent=39 // pred_check
          %p274 = pneg %p43
        $region42: #{tpu_custom_call.1} parent=39 // pred_check_branch
          %276 = sbr.rel (%p274) target = $region44
        $region43: #{tpu_custom_call.1} parent=39 // pred_region
          %s277 = sand.u32 %s33, 1
          %s278 = scalar_lea.sflag [#allocation4], %s277
          %s279 = sand.u32 %s33, 1
          %s280 = smul.addr %s279, 8
          %s281 = scalar_lea.vmem [#allocation3], %s280
          %s282 = smul.u32 2, %s23
          %s284 = ssub.s32 128, 128
          %285 = vsyncadd %s278, %s284
          %s286 = smul.addr %s282, 64
          %s287 = scalar_lea.hbm %s0, %s286
          %s288 = sshll.u32 %s281, 4
          %s289 = int_to_ptr.vmem [resolvable:$true] %s288
          %294 = dma.hbm_to_vmem [thread:$0]  %s287, 128, %s289, %s278, 64, 64, 4
        $region44: #{tpu_custom_call.1} parent=39 // pred_fallthru
          _
        // Predicated region
        $region45: #{tpu_custom_call.1} parent=39 // pred_check
          %p295 = pneg %p69
        $region46: #{tpu_custom_call.1} parent=39 // pred_check_branch
          %297 = sbr.rel (%p295) target = $region48
        $region47: #{tpu_custom_call.1} parent=39 // pred_region
          %s298 = smul.u32 2, %s23
          %p299 = scmp.lt.s32.totalorder %s298, 3
          %s300 = scalar_select %p299, %s298, 3
          %s301 = scalar_lea.vmem %s1, %s300
          %s302 = smul.u32 2, %s23
        $region48: #{tpu_custom_call.1} parent=39 // pred_fallthru
          _
      $region40: #{tpu_custom_call.1} parent=5 // pred_fallthru
        _
      %p303 = scmp.le.s32.totalorder 1, %s23
      %p304 = scmp.lt.s32.totalorder %s23, 3
      %p305 = pnand %p303, %p304
      %p306 = pneg %p305
      // Predicated region
      $region49: #{tpu_custom_call.1} parent=5 // pred_check
        _
      $region50: #{tpu_custom_call.1} parent=5 // pred_check_branch
        %308 = sbr.rel (%p305) target = $region52
      $region51: #{tpu_custom_call.1} parent=5 // pred_region
        %s309 = ssub.s32 %s23, 1
        %s310 = sand.u32 %s36, 1
        %s311 = scalar_lea.sflag [#allocation4], %s310
        %s312 = sand.u32 %s36, 1
        %s313 = smul.addr %s312, 8
        %s314 = scalar_lea.vmem [#allocation3], %s313
        // Predicated region
        $region53: #{tpu_custom_call.1} parent=51 // pred_check
          %p315 = pneg %p49
        $region54: #{tpu_custom_call.1} parent=51 // pred_check_branch
          %317 = sbr.rel (%p315) target = $region56
        $region55: #{tpu_custom_call.1} parent=51 // pred_region
          %318 = dma.done %s311, 128
        $region56: #{tpu_custom_call.1} parent=51 // pred_fallthru
          _
        // Predicated region
        $region57: #{tpu_custom_call.1} parent=51 // pred_check
          %p319 = pneg %p96
        $region58: #{tpu_custom_call.1} parent=51 // pred_check_branch
          %321 = sbr.rel (%p319) target = $region60
        $region59: #{tpu_custom_call.1} parent=51 // pred_region
          %322 = dma.done [#allocation7], 256
        $region60: #{tpu_custom_call.1} parent=51 // pred_fallthru
          _
        %s323 = sand.u32 %s36, 1
        %s324 = scalar_lea.sflag [#allocation4], %s323
        %s325 = sand.u32 %s36, 1
        %s326 = smul.addr %s325, 8
        %s327 = scalar_lea.vmem [#allocation3], %s326
        %p328 = pneg %p49
        %p329 = pneg %p46
        %s330 = smul.u32 2, %s28
        %p331 = scmp.lt.s32.totalorder %s330, 3
        %s332 = scalar_select %p331, %s330, 3
        %s333 = scalar_lea.vmem %s1, %s332
        %p334 = pneg %p75
        %p335 = pneg %p72
        %p336 = pneg %p96
        %p337 = pneg %p93
        %p338 = pneg %p117
        %p339 = pneg %p114
        %p340 = pneg %p138
        %p341 = pneg %p135
        %p342 = pneg %p159
        %p343 = pneg %p156
        %p344 = pneg %p180
        %p345 = pneg %p177
        %p346 = pneg %p201
        %p347 = pneg %p198
        %p348 = pneg %p227
        %p349 = pneg %p224
        %s350 = sand.u32 %s214, 1
        %s351 = scalar_lea.sflag [#allocation5], %s350
        %s352 = sand.u32 %s214, 1
        %s353 = smul.addr %s352, 2
        %s354 = scalar_lea.vmem [#allocation8], %s353
        %s355 = smul.u32 2, %s28
        %s356 = smul.u32 2, %s28
        %p357 = scmp.lt.s32.totalorder %s356, 3
        %s358 = scalar_select %p357, %s356, 3
        %s359 = scalar_lea.vmem %s1, %s358
        %s360 = smul.u32 2, %s28
        %s361 = smul.u32 2, %s28
        %v363 = vld [vmem:[%s314] sm:$0xf]
        %v364 = vld [vmem:[%s314 + $0x4] sm:$0xf]
        %v365 = vld [vmem:[#allocation6] sm:$0xf]
        %v366 = vld [vmem:[#allocation6 + $0x4] sm:$0xf]
        %v367 = vld [vmem:[#allocation6 + $0x8] sm:$0xf]
        %v368 = vld [vmem:[#allocation6 + $0xc] sm:$0xf]
        %v371 = vunpack.c.l.b16 %v363
        %v372 = vunpack.c.l.b16 %v364
        %v373 = vpack.c.b16 %v372, %v371
        %v378 = vunpack.c.l.b16 %v365
        %v379 = vunpack.c.l.b16 %v366
        %v380 = vunpack.c.l.b16 %v367
        %v381 = vunpack.c.l.b16 %v368
        %v382 = vpack.c.b16 %v379, %v378
        %v383 = vpack.c.b16 %v381, %v380
        %vm386 = vcmask 261120
        %v388 = vsel %vm386, %v373, 0
        %390 = vmatprep.subr.bf16.mxu0 0
        %391 = vmatpush1.bf16.msra.mxu0 %v382
        %392 = vmatprep.subr.bf16.mxu0 0
        %393 = vmatpush1.bf16.msra.mxu0 %v383
        %394 = vmatprep.subr.bf16.mxu0 0
        %395 = vmatpush1.bf16.msra.mxu0 0
        %396 = vmatprep.subr.bf16.mxu0 0
        %397 = vmatpush1.bf16.msra.mxu0 0
        %398 = vmatprep.subr.bf16.mxu0 0
        %399 = vmatpush1.bf16.msra.mxu0 0
        %400 = vmatprep.subr.bf16.mxu0 0
        %401 = vmatpush1.bf16.msra.mxu0 0
        %402 = vmatprep.subr.bf16.mxu0 0
        %403 = vmatpush1.bf16.msra.mxu0 0
        %404 = vmatprep.subr.bf16.mxu0 0
        %405 = vmatpush1.bf16.msra.mxu0 0
        %406 = vmatprep.subr.bf16.mxu0 0
        %407 = vmatpush1.bf16.msra.mxu0 0
        %408 = vmatprep.subr.bf16.mxu0 0
        %409 = vmatpush1.bf16.msra.mxu0 0
        %410 = vmatprep.subr.bf16.mxu0 0
        %411 = vmatpush1.bf16.msra.mxu0 0
        %412 = vmatprep.subr.bf16.mxu0 0
        %413 = vmatpush1.bf16.msra.mxu0 0
        %414 = vmatprep.subr.bf16.mxu0 0
        %415 = vmatpush1.bf16.msra.mxu0 0
        %416 = vmatprep.subr.bf16.mxu0 0
        %417 = vmatpush1.bf16.msra.mxu0 0
        %418 = vmatprep.subr.bf16.mxu0 0
        %419 = vmatpush1.bf16.msra.mxu0 0
        %420 = vmatprep.subr.bf16.mxu0 0
        %421 = vmatpush1.bf16.msra.mxu0 0
        %422 = vmatprep.mubr.bf16.mxu0 0
        %423 = vmatmul.mubr.bf16.gmra.mrb[0].mxu0 %v388
        %v424 = vpop.f32.mrb[0].mxu0
        %v425 = vadd.f32 0.0, %v424
        %v426 = vpop.f32.mrb[0].mxu0
        %v427 = vpop.f32.mrb[0].mxu0
        %v428 = vadd.f32 0.0, %v427
        %v429 = vpop.f32.mrb[0].mxu0
        %430 = vdwg.mxu0
        %v431 = vld [vmem:[%s3] sm:$0x1]
        %v433 = vlaneseq
        %v434 = vshrl.u32 %v433, 7
        %v435 = vsub.s32 0, %v434
        %v436 = vrot.slane %v431, %v435
        %v438 = vadd.f32 %v425, %v436
        %v439 = vadd.f32 %v428, %v436
        %v440 = vsel %vm386, %v438, 0.0
        %441 = vadd.xlane.f32.xlu0 %v440
        %v442 = vpop.xlane.xlu0 %441
        %v443 = vsel %vm386, %v439, 0.0
        %444 = vadd.xlane.f32.xlu0 %v443
        %v445 = vpop.xlane.xlu0 %444
        %v446 = vrcp.pop 32.0
        %v447 = vmul.f32 %v442, %v446
        %v448 = vmul.f32 %v445, %v446
        %v449 = vsub.f32 %v438, %v447
        %v450 = vsub.f32 %v439, %v448
        %v451 = vmul.f32 %v449, %v449
        %v452 = vmul.f32 %v450, %v450
        %v453 = vsel %vm386, %v451, 0.0
        %454 = vadd.xlane.f32.xlu0 %v453
        %v455 = vpop.xlane.xlu0 %454
        %v456 = vsel %vm386, %v452, 0.0
        %457 = vadd.xlane.f32.xlu0 %v456
        %v458 = vpop.xlane.xlu0 %457
        %v459 = vmul.f32 %v455, %v446
        %v460 = vmul.f32 %v458, %v446
        %v461 = vadd.f32 %v459, 1e-05
        %v462 = vadd.f32 %v460, 1e-05
        %v463 = vrsqrt.pop %v461
        %v464 = vrsqrt.pop %v462
        %v465 = vmul.f32 %v449, %v463
        %v466 = vmul.f32 %v450, %v464
        %v467 = vld [vmem:[%s4] sm:$0x1]
        %v469 = vlaneseq
        %v470 = vshrl.u32 %v469, 7
        %v471 = vsub.s32 0, %v470
        %v472 = vrot.slane %v467, %v471
        %v474 = vmul.f32 %v465, %v472
        %v475 = vmul.f32 %v466, %v472
        %v476 = vld [vmem:[%s5] sm:$0x1]
        %v478 = vlaneseq
        %v479 = vshrl.u32 %v478, 7
        %v480 = vsub.s32 0, %v479
        %v481 = vrot.slane %v476, %v480
        %v483 = vadd.f32 %v474, %v481
        %v484 = vadd.f32 %v475, %v481
        %v485 = vmul.f32 %v483, 0.5
        %v486 = vmul.f32 %v484, 0.5
        %v487 = vmul.f32 %v483, 0.70710677
        %v488 = vmul.f32 %v484, 0.70710677
        %v489 = verf.f32.pop %v487
        %v490 = verf.f32.pop %v488
        %v491 = vadd.f32 %v489, 1.0
        %v492 = vadd.f32 %v490, 1.0
        %v493 = vmul.f32 %v485, %v491
        %v494 = vmul.f32 %v486, %v492
        %v495 = vld [vmem:[%s6] sm:$0x1]
        %v497 = vlaneseq
        %v498 = vshrl.u32 %v497, 7
        %v499 = vsub.s32 0, %v498
        %v500 = vrot.slane %v495, %v499
        %v502 = vmul.f32 %v493, %v500
        %v503 = vmul.f32 %v494, %v500
        %v504 = vsel %vm386, %v502, 0.0
        %505 = vadd.xlane.f32.xlu0 %v504
        %v506 = vpop.xlane.xlu0 %505
        %v507 = vsel %vm386, %v503, 0.0
        %508 = vadd.xlane.f32.xlu0 %v507
        %v509 = vpop.xlane.xlu0 %508
        %v510 = vld [vmem:[#allocation2] sm:$0x1]
        %v512 = vlaneseq
        %v513 = vshrl.u32 %v512, 7
        %v514 = vsub.s32 0, %v513
        %v515 = vrot.slane %v510, %v514
        %516 = vset.pattern.permute.xlu0 0
        %517 = vperm.xlu0 %516, %v515
        %v518 = vpop.permute.xlu0 %517
        %v520 = vadd.f32 %v506, %v518
        %v521 = vadd.f32 %v509, %v518
        %v522 = vld [vmem:[%s359] sm:$0x1]
        %v523 = vld [vmem:[%s359 + $0x1] sm:$0x1]
        %vm524 = vcmp.eq.f32.partialorder %v522, 0.0
        %vm525 = vcmp.eq.f32.partialorder %v523, 0.0
        %v528 = vlaneseq
        %v529 = vshrl.u32 %v528, 7
        %v530 = vsub.s32 0, %v529
        %v531 = vrot.slane %v520, %v530
        %v532 = vlaneseq
        %v533 = vshrl.u32 %v532, 7
        %v534 = vsub.s32 1, %v533
        %v535 = vrot.slane %v520, %v534
        %v536 = vlaneseq
        %v537 = vshrl.u32 %v536, 7
        %v538 = vsub.s32 2, %v537
        %v539 = vrot.slane %v520, %v538
        %v540 = vlaneseq
        %v541 = vshrl.u32 %v540, 7
        %v542 = vsub.s32 3, %v541
        %v543 = vrot.slane %v520, %v542
        %v544 = vlaneseq
        %v545 = vshrl.u32 %v544, 7
        %v546 = vsub.s32 4, %v545
        %v547 = vrot.slane %v520, %v546
        %v548 = vlaneseq
        %v549 = vshrl.u32 %v548, 7
        %v550 = vsub.s32 5, %v549
        %v551 = vrot.slane %v520, %v550
        %v552 = vlaneseq
        %v553 = vshrl.u32 %v552, 7
        %v554 = vsub.s32 6, %v553
        %v555 = vrot.slane %v520, %v554
        %v556 = vlaneseq
        %v557 = vshrl.u32 %v556, 7
        %v558 = vsub.s32 7, %v557
        %v559 = vrot.slane %v520, %v558
        %v560 = vlaneseq
        %v561 = vshrl.u32 %v560, 7
        %v562 = vsub.s32 0, %v561
        %v563 = vrot.slane %v521, %v562
        %v564 = vlaneseq
        %v565 = vshrl.u32 %v564, 7
        %v566 = vsub.s32 1, %v565
        %v567 = vrot.slane %v521, %v566
        %v568 = vlaneseq
        %v569 = vshrl.u32 %v568, 7
        %v570 = vsub.s32 2, %v569
        %v571 = vrot.slane %v521, %v570
        %v572 = vlaneseq
        %v573 = vshrl.u32 %v572, 7
        %v574 = vsub.s32 3, %v573
        %v575 = vrot.slane %v521, %v574
        %v576 = vlaneseq
        %v577 = vshrl.u32 %v576, 7
        %v578 = vsub.s32 4, %v577
        %v579 = vrot.slane %v521, %v578
        %v580 = vlaneseq
        %v581 = vshrl.u32 %v580, 7
        %v582 = vsub.s32 5, %v581
        %v583 = vrot.slane %v521, %v582
        %v584 = vlaneseq
        %v585 = vshrl.u32 %v584, 7
        %v586 = vsub.s32 6, %v585
        %v587 = vrot.slane %v521, %v586
        %v588 = vlaneseq
        %v589 = vshrl.u32 %v588, 7
        %v590 = vsub.s32 7, %v589
        %v591 = vrot.slane %v521, %v590
        %v592 = vcombine.low %v531, %v535
        %v593 = vcombine.low %v539, %v543
        %v594 = vcombine.low %v547, %v551
        %v595 = vcombine.low %v555, %v559
        %v597 = vunpack.c.l.s4 1966171168
        %v598 = vunpack.c.0.s8 %v597
        %v599 = vlaneseq
        %v600 = vshrl.u32 %v599, 7
        %v601 = vsub.s32 %v598, %v600
        %v602 = vrot.slane %v592, %v601
        %v604 = vunpack.c.l.s4 1966171168
        %v605 = vunpack.c.0.s8 %v604
        %v606 = vlaneseq
        %v607 = vshrl.u32 %v606, 7
        %v608 = vsub.s32 %v605, %v607
        %v609 = vrot.slane %v593, %v608
        %v611 = vunpack.c.l.s4 1966171168
        %v612 = vunpack.c.0.s8 %v611
        %v613 = vlaneseq
        %v614 = vshrl.u32 %v613, 7
        %v615 = vsub.s32 %v612, %v614
        %v616 = vrot.slane %v594, %v615
        %v618 = vunpack.c.l.s4 1966171168
        %v619 = vunpack.c.0.s8 %v618
        %v620 = vlaneseq
        %v621 = vshrl.u32 %v620, 7
        %v622 = vsub.s32 %v619, %v621
        %v623 = vrot.slane %v595, %v622
        %v624 = vcombine.low %v602, %v609
        %v625 = vcombine.low %v616, %v623
        %v627 = vunpack.c.l.s4 1966171168
        %v628 = vunpack.c.0.s8 %v627
        %v629 = vlaneseq
        %v630 = vshrl.u32 %v629, 7
        %v631 = vsub.s32 %v628, %v630
        %v632 = vrot.slane %v624, %v631
        %v634 = vunpack.c.l.s4 1966171168
        %v635 = vunpack.c.0.s8 %v634
        %v636 = vlaneseq
        %v637 = vshrl.u32 %v636, 7
        %v638 = vsub.s32 %v635, %v637
        %v639 = vrot.slane %v625, %v638
        %v640 = vcombine.low %v632, %v639
        %v641 = vcombine.low %v563, %v567
        %v642 = vcombine.low %v571, %v575
        %v643 = vcombine.low %v579, %v583
        %v644 = vcombine.low %v587, %v591
        %v646 = vunpack.c.l.s4 1966171168
        %v647 = vunpack.c.0.s8 %v646
        %v648 = vlaneseq
        %v649 = vshrl.u32 %v648, 7
        %v650 = vsub.s32 %v647, %v649
        %v651 = vrot.slane %v641, %v650
        %v653 = vunpack.c.l.s4 1966171168
        %v654 = vunpack.c.0.s8 %v653
        %v655 = vlaneseq
        %v656 = vshrl.u32 %v655, 7
        %v657 = vsub.s32 %v654, %v656
        %v658 = vrot.slane %v642, %v657
        %v660 = vunpack.c.l.s4 1966171168
        %v661 = vunpack.c.0.s8 %v660
        %v662 = vlaneseq
        %v663 = vshrl.u32 %v662, 7
        %v664 = vsub.s32 %v661, %v663
        %v665 = vrot.slane %v643, %v664
        %v667 = vunpack.c.l.s4 1966171168
        %v668 = vunpack.c.0.s8 %v667
        %v669 = vlaneseq
        %v670 = vshrl.u32 %v669, 7
        %v671 = vsub.s32 %v668, %v670
        %v672 = vrot.slane %v644, %v671
        %v673 = vcombine.low %v651, %v658
        %v674 = vcombine.low %v665, %v672
        %v676 = vunpack.c.l.s4 1966171168
        %v677 = vunpack.c.0.s8 %v676
        %v678 = vlaneseq
        %v679 = vshrl.u32 %v678, 7
        %v680 = vsub.s32 %v677, %v679
        %v681 = vrot.slane %v673, %v680
        %v683 = vunpack.c.l.s4 1966171168
        %v684 = vunpack.c.0.s8 %v683
        %v685 = vlaneseq
        %v686 = vshrl.u32 %v685, 7
        %v687 = vsub.s32 %v684, %v686
        %v688 = vrot.slane %v674, %v687
        %v689 = vcombine.low %v681, %v688
        %690 = vset.pattern.permute.xlu0 0
        %691 = vperm.xlu0 %690, %v640
        %v692 = vpop.permute.xlu0 %691
        %693 = vset.pattern.permute.xlu0 0
        %694 = vperm.xlu0 %693, %v689
        %v695 = vpop.permute.xlu0 %694
        %v696 = vlaneseq
        %v697 = vand.u32 %v696, 127
        %v698 = vlaneseq
        %v699 = vshrl.u32 %v698, 7
        %v700 = vsub.s32 %v697, %v699
        %v701 = vrot.slane %v692, %v700
        %v702 = vlaneseq
        %v703 = vshrl.u32 %v702, 7
        %v704 = vsub.s32 %v697, %v703
        %v705 = vrot.slane %v695, %v704
        %v707 = vunpack.c.l.s4 1966171168
        %v708 = vunpack.c.0.s8 %v707
        %v709 = vlaneseq
        %v710 = vshrl.u32 %v709, 7
        %v711 = vsub.s32 %v708, %v710
        %v712 = vrot.slane %v701, %v711
        %v714 = vunpack.c.l.s4 1966171168
        %v715 = vunpack.c.0.s8 %v714
        %v716 = vlaneseq
        %v717 = vshrl.u32 %v716, 7
        %v718 = vsub.s32 %v715, %v717
        %v719 = vrot.slane %v712, %v718
        %v721 = vunpack.c.l.s4 1966171168
        %v722 = vunpack.c.0.s8 %v721
        %v723 = vlaneseq
        %v724 = vshrl.u32 %v723, 7
        %v725 = vsub.s32 %v722, %v724
        %v726 = vrot.slane %v705, %v725
        %v728 = vunpack.c.l.s4 1966171168
        %v729 = vunpack.c.0.s8 %v728
        %v730 = vlaneseq
        %v731 = vshrl.u32 %v730, 7
        %v732 = vsub.s32 %v729, %v731
        %v733 = vrot.slane %v726, %v732
        %v736 = vsel %vm524, -1e+30, %v719
        %v737 = vsel %vm525, -1e+30, %v733
        %v740 = vcombine.low %v736, %v737
        %v742 = vunpack.c.l.s4 1966171168
        %v743 = vunpack.c.0.s8 %v742
        %v744 = vlaneseq
        %v745 = vshrl.u32 %v744, 7
        %v746 = vsub.s32 %v743, %v745
        %v747 = vrot.slane %v740, %v746
        %v749 = vunpack.c.l.s4 1966171168
        %v750 = vunpack.c.0.s8 %v749
        %v751 = vlaneseq
        %v752 = vshrl.u32 %v751, 7
        %v753 = vsub.s32 %v750, %v752
        %v754 = vrot.slane %v747, %v753
        %vm756 = vcmask 58368
        %v757 = vsel %vm756, %v754, -inf
        %758 = vmax.xlane.f32.xlu0 %v757
        %v759 = vpop.xlane.xlu0 %758
        %v761 = vlaneseq
        %v762 = vshrl.u32 %v761, 7
        %v763 = vsub.s32 0, %v762
        %v764 = vrot.slane %v759, %v763
        %v765 = vlaneseq
        %v766 = vshrl.u32 %v765, 7
        %v767 = vsub.s32 1, %v766
        %v768 = vrot.slane %v759, %v767
        %v771 = vsub.f32 %v736, %v764
        %v772 = vsub.f32 %v737, %v768
        %v773 = vmul.f32 %v771, 1.442695
        %v774 = vpow.pop %v773
        %v775 = vmul.f32 %v772, 1.442695
        %v776 = vpow.pop %v775
        %v779 = vcombine.low %v774, %v776
        %v781 = vunpack.c.l.s4 1966171168
        %v782 = vunpack.c.0.s8 %v781
        %v783 = vlaneseq
        %v784 = vshrl.u32 %v783, 7
        %v785 = vsub.s32 %v782, %v784
        %v786 = vrot.slane %v779, %v785
        %v788 = vunpack.c.l.s4 1966171168
        %v789 = vunpack.c.0.s8 %v788
        %v790 = vlaneseq
        %v791 = vshrl.u32 %v790, 7
        %v792 = vsub.s32 %v789, %v791
        %v793 = vrot.slane %v786, %v792
        %v795 = vsel %vm756, %v793, 0.0
        %796 = vadd.xlane.f32.xlu0 %v795
        %v797 = vpop.xlane.xlu0 %796
        %v798 = vrcp.pop %v797
        %v800 = vlaneseq
        %v801 = vshrl.u32 %v800, 7
        %v802 = vsub.s32 0, %v801
        %v803 = vrot.slane %v798, %v802
        %v804 = vlaneseq
        %v805 = vshrl.u32 %v804, 7
        %v806 = vsub.s32 1, %v805
        %v807 = vrot.slane %v798, %v806
        %v810 = vmul.f32 %v774, %v803
        %v811 = vmul.f32 %v776, %v807
        %v812 = vpack.c.bf16 %v810, %v810
        %v813 = vpack.c.bf16 %v811, %v811
        %vm814 = vcmask 64512
        %v816 = vsel %vm814, %v812, 0
        %vm818 = vcmask 1043456
        %v820 = vsel %vm818, %v363, 0
        %822 = vmatprep.subr.bf16.mxu0 0
        %823 = vmatpush1.bf16.msra.mxu0 %v820
        %824 = vmatprep.subr.bf16.mxu0 0
        %825 = vmatpush1.bf16.msra.mxu0 0
        %826 = vmatprep.subr.bf16.mxu0 0
        %827 = vmatpush1.bf16.msra.mxu0 0
        %828 = vmatprep.subr.bf16.mxu0 0
        %829 = vmatpush1.bf16.msra.mxu0 0
        %830 = vmatprep.subr.bf16.mxu0 0
        %831 = vmatpush1.bf16.msra.mxu0 0
        %832 = vmatprep.subr.bf16.mxu0 0
        %833 = vmatpush1.bf16.msra.mxu0 0
        %834 = vmatprep.subr.bf16.mxu0 0
        %835 = vmatpush1.bf16.msra.mxu0 0
        %836 = vmatprep.subr.bf16.mxu0 0
        %837 = vmatpush1.bf16.msra.mxu0 0
        %838 = vmatprep.subr.bf16.mxu0 0
        %839 = vmatpush1.bf16.msra.mxu0 0
        %840 = vmatprep.subr.bf16.mxu0 0
        %841 = vmatpush1.bf16.msra.mxu0 0
        %842 = vmatprep.subr.bf16.mxu0 0
        %843 = vmatpush1.bf16.msra.mxu0 0
        %844 = vmatprep.subr.bf16.mxu0 0
        %845 = vmatpush1.bf16.msra.mxu0 0
        %846 = vmatprep.subr.bf16.mxu0 0
        %847 = vmatpush1.bf16.msra.mxu0 0
        %848 = vmatprep.subr.bf16.mxu0 0
        %849 = vmatpush1.bf16.msra.mxu0 0
        %850 = vmatprep.subr.bf16.mxu0 0
        %851 = vmatpush1.bf16.msra.mxu0 0
        %852 = vmatprep.subr.bf16.mxu0 0
        %853 = vmatpush1.bf16.msra.mxu0 0
        %854 = vmatprep.mubr.bf16.mxu0 0
        %855 = vmatmul.mubr.bf16.gmra.mrb[0].mxu0 %v816
        %v856 = vpop.f32.mrb[0].mxu0
        %v857 = vadd.f32 0.0, %v856
        %v858 = vpop.f32.mrb[0].mxu0
        %v859 = vpop.f32.mrb[0].mxu0
        %v860 = vpop.f32.mrb[0].mxu0
        %861 = vdwg.mxu0
        %v863 = vsel %vm814, %v813, 0
        %v866 = vsel %vm818, %v364, 0
        %868 = vmatprep.subr.bf16.mxu0 0
        %869 = vmatpush1.bf16.msra.mxu0 %v866
        %870 = vmatprep.subr.bf16.mxu0 0
        %871 = vmatpush1.bf16.msra.mxu0 0
        %872 = vmatprep.subr.bf16.mxu0 0
        %873 = vmatpush1.bf16.msra.mxu0 0
        %874 = vmatprep.subr.bf16.mxu0 0
        %875 = vmatpush1.bf16.msra.mxu0 0
        %876 = vmatprep.subr.bf16.mxu0 0
        %877 = vmatpush1.bf16.msra.mxu0 0
        %878 = vmatprep.subr.bf16.mxu0 0
        %879 = vmatpush1.bf16.msra.mxu0 0
        %880 = vmatprep.subr.bf16.mxu0 0
        %881 = vmatpush1.bf16.msra.mxu0 0
        %882 = vmatprep.subr.bf16.mxu0 0
        %883 = vmatpush1.bf16.msra.mxu0 0
        %884 = vmatprep.subr.bf16.mxu0 0
        %885 = vmatpush1.bf16.msra.mxu0 0
        %886 = vmatprep.subr.bf16.mxu0 0
        %887 = vmatpush1.bf16.msra.mxu0 0
        %888 = vmatprep.subr.bf16.mxu0 0
        %889 = vmatpush1.bf16.msra.mxu0 0
        %890 = vmatprep.subr.bf16.mxu0 0
        %891 = vmatpush1.bf16.msra.mxu0 0
        %892 = vmatprep.subr.bf16.mxu0 0
        %893 = vmatpush1.bf16.msra.mxu0 0
        %894 = vmatprep.subr.bf16.mxu0 0
        %895 = vmatpush1.bf16.msra.mxu0 0
        %896 = vmatprep.subr.bf16.mxu0 0
        %897 = vmatpush1.bf16.msra.mxu0 0
        %898 = vmatprep.subr.bf16.mxu0 0
        %899 = vmatpush1.bf16.msra.mxu0 0
        %900 = vmatprep.mubr.bf16.mxu0 0
        %901 = vmatmul.mubr.bf16.gmra.mrb[0].mxu0 %v863
        %v902 = vpop.f32.mrb[0].mxu0
        %v903 = vadd.f32 0.0, %v902
        %v904 = vpop.f32.mrb[0].mxu0
        %v905 = vpop.f32.mrb[0].mxu0
        %v906 = vpop.f32.mrb[0].mxu0
        %907 = vdwg.mxu0
        %vm908 = vcmask 253952
        %909 = vst.msk [vmem:[%s354] sm:$0x1] %vm908, %v857
        %910 = vst.msk [vmem:[%s354 + $0x1] sm:$0x1] %vm908, %v903
        %s911 = sand.u32 %s214, 1
        %s912 = scalar_lea.sflag [#allocation5], %s911
        %s913 = sand.u32 %s214, 1
        %s914 = smul.addr %s913, 2
        %s915 = scalar_lea.vmem [#allocation8], %s914
        // Predicated region
        $region61: #{tpu_custom_call.1} parent=51 // pred_check
          %p916 = pneg %p224
        $region62: #{tpu_custom_call.1} parent=51 // pred_check_branch
          %918 = sbr.rel (%p916) target = $region64
        $region63: #{tpu_custom_call.1} parent=51 // pred_region
          %s919 = smul.u32 2, %s28
          %s921 = ssub.s32 32, 32
          %922 = vsyncadd %s912, %s921
          %s923 = smul.addr %s919, 16
          %s924 = scalar_lea.hbm %s8, %s923
          %s925 = sshll.u32 %s915, 4
          %s926 = int_to_ptr.vmem [resolvable:$true] %s925
          %931 = dma.vmem_to_hbm [thread:$0]  %s926, 32, %s924, %s912, 16, 16, 1
        $region64: #{tpu_custom_call.1} parent=51 // pred_fallthru
          _
      $region52: #{tpu_custom_call.1} parent=5 // pred_fallthru
        _
      %p932 = scmp.le.s32.totalorder 2, %s23
      // Predicated region
      $region65: #{tpu_custom_call.1} parent=5 // pred_check
        %p933 = pneg %p932
      $region66: #{tpu_custom_call.1} parent=5 // pred_check_branch
        %935 = sbr.rel (%p933) target = $region68
      $region67: #{tpu_custom_call.1} parent=5 // pred_region
        %s936 = ssub.s32 %s23, 2
        // Predicated region
        $region69: #{tpu_custom_call.1} parent=67 // pred_check
          %p937 = pneg %p230
        $region70: #{tpu_custom_call.1} parent=67 // pred_check_branch
          %939 = sbr.rel (%p937) target = $region72
        $region71: #{tpu_custom_call.1} parent=67 // pred_region
          %s940 = sand.u32 %s215, 1
          %s941 = scalar_lea.sflag [#allocation5], %s940
          %s942 = sand.u32 %s215, 1
          %s943 = smul.addr %s942, 2
          %s944 = scalar_lea.vmem [#allocation8], %s943
          %945 = dma.done %s941, 32
        $region72: #{tpu_custom_call.1} parent=67 // pred_fallthru
          _
      $region68: #{tpu_custom_call.1} parent=5 // pred_fallthru
        _
    $region6: #{tpu_custom_call.1} parent=1 // loop_footer
      %s27 = sadd.s32 1, %s23
    $region7: #{tpu_custom_call.1} parent=1 // loop_footer_branch
      %22 = sbr.rel target = $region3
    $region8: #{tpu_custom_call.1} parent=1 // loop_exit
      _
    %946 = vsyncpa [#allocation4], 1
    %s947 = scalar_lea.sflag [#allocation4], 1
    %948 = vsyncpa %s947, 1
    %949 = vsyncpa [#allocation7], 1
    %950 = vsyncpa [#allocation5], 1
    %s951 = scalar_lea.sflag [#allocation5], 1
    %952 = vsyncpa %s951, 1

</llo_original>
